<compile_context>
chip_gen: v7x
topology: tpu7x:2x2x1
jax: 0.10.0
libtpu: 0.0.40
codegen_flags: <defaults>
</compile_context>

<pallas_src>
import functools

import jax
import jax.numpy as jnp
from jax.experimental import pallas as pl
from jax.experimental.pallas import tpu as pltpu


# ---------------------------------------------------------------------------
# Sinkhorn-Knopp teacher assignments (one teacher crop per grid step)
# ---------------------------------------------------------------------------
def _sinkhorn_kernel(ts_ref, out_ref, *, epsilon, num_iters):
    s = ts_ref[...].astype(jnp.float32) * (1.0 / epsilon)
    if num_iters == 0:
        m = jnp.max(s, axis=-1, keepdims=True)
        e = jnp.exp(s - m)
        out_ref[...] = e * pl.reciprocal(jnp.sum(e, axis=-1, keepdims=True), approx=False)
        return

    bsz, kproto = s.shape
    # torch works on Q = exp(s - max).t() of shape (K, B); we keep the transposed
    # (B, K) layout and swap the reduction axes accordingly.
    # TODO(synk): all_reduce_max / all_reduce_sum skipped (world_size assumed 1).
    big_m = jnp.max(s)
    q = jnp.exp(s - big_m)
    q = q * (1.0 / jnp.sum(q))
    r = 1.0 / kproto          # r = ones(K) / K
    c = 1.0 / bsz             # c = ones(n) / (world_size * n)
    # approx=False kept for the normalizations: the assignments feed the loss directly
    # and the reference tolerance is tight; the Sinkhorn kernel is tiny anyway.
    for _ in range(num_iters):
        u = jnp.sum(q, axis=0, keepdims=True)            # torch: sum over dim=1 -> (K,)
        # numerical-stability fixup of the original distributed_sinkhornknopp:
        # if any prototype column underflowed to an all-zero sum, add 1e-12 to Q
        # (u recomputed in closed form: each column gains bsz * 1e-12).
        eps_fix = jnp.where(jnp.min(u) == 0.0, 1e-12, 0.0)
        q = q + eps_fix
        u = u + bsz * eps_fix
        q = q * (r * pl.reciprocal(u, approx=False))
        # TODO(synk): inf-replacement step of the original distributed_sinkhornknopp skipped.
        q = q * (c * pl.reciprocal(jnp.sum(q, axis=1, keepdims=True), approx=False))
    q = q * pl.reciprocal(jnp.sum(q, axis=1, keepdims=True), approx=False)
    # TODO(synk): hard-assignment (argmax scatter) branch not implemented
    #             (num_iteration < temp_hard_assignment_iters is False here).
    out_ref[...] = q


# ---------------------------------------------------------------------------
# Per-student-crop cross-entropy (log-softmax once, static loop over teacher crops)
# ---------------------------------------------------------------------------
def _accumulate_crop_loss(x_scaled, w_ref, a_ref, out_ref, *, nca, b, num_crops):
    """x_scaled: (b, K) f32 scores/temperature for the current student crop."""
    p = pl.program_id(0)                                   # student crop index
    m = jnp.max(x_scaled, axis=-1, keepdims=True)
    lse = m + jnp.log(jnp.sum(jnp.exp(x_scaled - m), axis=-1, keepdims=True))
    logp = x_scaled - lse                                  # log_softmax, computed ONCE
    total = jnp.float32(0.0)
    for i in range(nca):                                   # nca is tiny (1-2): static unroll
        a_i = a_ref[i * b:(i + 1) * b, :].astype(jnp.float32)   # static slice of resident block
        w_i = w_ref[i * num_crops + p]                     # SMEM pair-weight (0 if unused pair)
        total = total + w_i * jnp.sum(a_i * logp)
    val = (-total) * (1.0 / b)                             # -mean over batch, pair-weighted
    # lane-dense (1, 128) row; wrapper reads lane 0 of each crop row.
    out_ref[...] = jnp.full(out_ref.shape, val, dtype=out_ref.dtype)


def _fused_xent_kernel(w_ref, a_ref, l_ref, p_ref, out_ref, *, inv_temp, nca, b, num_crops):
    # w_ref: (nca*num_crops,) f32 pair weights in SMEM
    # a_ref: (nca*b, K) f32 assignments (VMEM-resident, constant index_map)
    # l_ref: (b, D) bf16 logits for student crop p
    # p_ref: (D, K) bf16 prototypes (VMEM-resident, constant index_map, single-buffered)
    scores = jnp.dot(l_ref[...], p_ref[...], preferred_element_type=jnp.float32)
    _accumulate_crop_loss(scores * inv_temp, w_ref, a_ref, out_ref,
                          nca=nca, b=b, num_crops=num_crops)


def _xent_kernel(w_ref, a_ref, s_ref, out_ref, *, inv_temp, nca, b, num_crops):
    # prototypes=None path: scores are the logits themselves (upcast in-kernel).
    x = s_ref[...].astype(jnp.float32) * inv_temp
    _accumulate_crop_loss(x, w_ref, a_ref, out_ref, nca=nca, b=b, num_crops=num_crops)


# ---------------------------------------------------------------------------
# Wrapper (forward pass of SwAVDistillationCriterion)
# ---------------------------------------------------------------------------
def swav_distillation_loss(logits, teacher_scores, teacher_prototypes, *,
                           temperature, num_crops, num_iters, epsilon,
                           swapped_assignment):
    # TODO(synk): use_double_prec path, teacher-scores queue and NaN dump-to-disk
    #             diagnostics are not reproduced.
    n_total, feat_dim = logits.shape
    assert n_total % num_crops == 0
    b = n_total // num_crops
    assert teacher_scores.shape[0] % b == 0
    nca = teacher_scores.shape[0] // b            # num_crops_for_assign
    kproto = teacher_scores.shape[1]

    # ---- teacher assignments (Sinkhorn-Knopp), one crop per grid step -------
    assignments = pl.pallas_call(
        functools.partial(_sinkhorn_kernel, epsilon=float(epsilon), num_iters=int(num_iters)),
        out_shape=jax.ShapeDtypeStruct((nca * b, kproto), jnp.float32),
        grid=(nca,),
        in_specs=[pl.BlockSpec((b, kproto), lambda i: (i, 0))],
        out_specs=pl.BlockSpec((b, kproto), lambda i: (i, 0)),
        compiler_params=pltpu.CompilerParams(dimension_semantics=("parallel",)),
    )(teacher_scores)

    # ---- static crop pairing -> (nca, num_crops) weight table ---------------
    w_tbl = [[0.0] * num_crops for _ in range(nca)]
    for i in range(nca):
        if nca == 1:
            ids = list(range(1 if swapped_assignment else 0, num_crops))
        elif swapped_assignment:
            ids = [p for p in range(num_crops) if p != i]
        else:
            ids = [i] + list(range(2, num_crops))
        w = 1.0 / (len(ids) * nca)
        for p in ids:
            w_tbl[i][p] += w                      # += handles duplicate ids like the torch loop
    w_flat = jnp.asarray([w_tbl[i][p] for i in range(nca) for p in range(num_crops)],
                         jnp.float32)

    inv_temp = 1.0 / float(temperature)
    lanes = 128                                   # lane-dense per-crop loss rows
    out_shape = jax.ShapeDtypeStruct((num_crops, lanes), jnp.float32)
    out_spec = pl.BlockSpec((1, lanes), lambda p: (p, 0))
    w_spec = pl.BlockSpec(memory_space=pltpu.MemorySpace.SMEM)
    # Full assignment matrix stays VMEM-resident; constant index_map => single buffer.
    a_spec = pl.BlockSpec((nca * b, kproto), lambda p: (0, 0),
                          pipeline_mode=pl.Buffered(buffer_count=1))
    params = pltpu.CompilerParams(dimension_semantics=("parallel",))

    if teacher_prototypes is not None:
        # Fused linear + cross-entropy: bf16 MXU operands, f32 accumulation.
        # Cast to bf16 BEFORE transposing (halves the bytes moved by the XLA transpose);
        # (D, K) layout keeps the prototype axis lane-dense. Single-buffered since its
        # index_map is constant (important for v7x 64 MiB / v5e 16 MiB-scoped VMEM).
        protos_dk = jnp.transpose(teacher_prototypes.astype(jnp.bfloat16))   # (D, K)
        logits_bf = logits.astype(jnp.bfloat16)
        partial = pl.pallas_call(
            functools.partial(_fused_xent_kernel, inv_temp=inv_temp,
                              nca=nca, b=b, num_crops=num_crops),
            out_shape=out_shape,
            grid=(num_crops,),
            in_specs=[w_spec,
                      a_spec,
                      pl.BlockSpec((b, feat_dim), lambda p: (p, 0)),
                      pl.BlockSpec((feat_dim, kproto), lambda p: (0, 0),
                                   pipeline_mode=pl.Buffered(buffer_count=1))],
            out_specs=out_spec,
            compiler_params=params,
        )(w_flat, assignments, logits_bf, protos_dk)
    else:
        assert feat_dim == kproto, (
            f"Incompatible feature dimensions {feat_dim} vs {kproto}")
        partial = pl.pallas_call(
            functools.partial(_xent_kernel, inv_temp=inv_temp,
                              nca=nca, b=b, num_crops=num_crops),
            out_shape=out_shape,
            grid=(num_crops,),
            in_specs=[w_spec,
                      a_spec,
                      pl.BlockSpec((b, kproto), lambda p: (p, 0))],
            out_specs=out_spec,
            compiler_params=params,
        )(w_flat, assignments, logits)            # original dtype; kernel upcasts

    return jnp.sum(partial[:, 0])


# ---------------------------------------------------------------------------
# Pure-JAX reference (mirrors the torch code) for a correctness check
# ---------------------------------------------------------------------------
def reference_loss(logits, teacher_scores, protos, *, temperature, num_crops,
                   num_iters, epsilon, swapped_assignment,
                   matmul_dtype=jnp.float32):
    b = logits.shape[0] // num_crops
    nca = teacher_scores.shape[0] // b
    if protos is not None:
        scores = jnp.dot(logits.astype(matmul_dtype), protos.T.astype(matmul_dtype),
                         preferred_element_type=jnp.float32)
    else:
        scores = logits.astype(jnp.float32)

    def sinkhorn(ts):
        if num_iters == 0:
            return jax.nn.softmax(ts / epsilon, axis=-1)
        a = ts / epsilon
        a = a - jnp.max(a)
        q = jnp.exp(a).T                                   # (K, n)
        q = q / jnp.sum(q)
        k, n = q.shape
        r = jnp.ones(k) / k
        c = jnp.ones(n) / n
        for _ in range(num_iters):
            u = jnp.sum(q, axis=1)
            q = q * (r / u)[:, None]
            q = q * (c / jnp.sum(q, axis=0))[None, :]
        return (q / jnp.sum(q, axis=0, keepdims=True)).T

    total = 0.0
    for i in range(nca):
        assign = sinkhorn(teacher_scores[i * b:(i + 1) * b])
        if nca == 1:
            ids = list(range(1 if swapped_assignment else 0, num_crops))
        elif swapped_assignment:
            ids = [p for p in range(num_crops) if p != i]
        else:
            ids = [i] + list(range(2, num_crops))
        loss = 0.0
        for p in ids:
            cs = scores[b * p:b * (p + 1)] / temperature
            loss -= jnp.mean(jnp.sum(assign * jax.nn.log_softmax(cs, axis=1), axis=1))
        total += loss / len(ids)
    return total / nca


# ---------------------------------------------------------------------------
if __name__ == "__main__":
    key = jax.random.PRNGKey(0)
    k1, k2, k3, k4 = jax.random.split(key, 4)

    B, D, K = 8, 32, 128                 # batch per crop, feature dim, num prototypes
    NUM_CROPS = 2                        # student crops
    NUM_ASSIGN_CROPS = 2                 # teacher crops

    logits = jax.random.normal(k1, (NUM_CROPS * B, D), jnp.float32)
    teacher_scores = jax.random.normal(k2, (NUM_ASSIGN_CROPS * B, K), jnp.float32)
    teacher_prototypes = jax.random.normal(k3, (K, D), jnp.float32) * 0.1

    cfg = dict(temperature=0.1, num_crops=NUM_CROPS, num_iters=3,
               epsilon=0.05, swapped_assignment=True)

    # --- fused path (with teacher prototypes) ---
    loss = jax.block_until_ready(
        swav_distillation_loss(logits, teacher_scores, teacher_prototypes, **cfg))

    ref_bf16 = reference_loss(logits, teacher_scores, teacher_prototypes,
                              matmul_dtype=jnp.bfloat16, **cfg)
    ref_f32 = reference_loss(logits, teacher_scores, teacher_prototypes,
                             matmul_dtype=jnp.float32, **cfg)
    assert bool(jnp.isfinite(loss)), f"non-finite loss {loss}"
    assert jnp.allclose(loss, ref_bf16, rtol=1e-3, atol=1e-3), (loss, ref_bf16)
    assert jnp.allclose(loss, ref_f32, rtol=5e-2, atol=5e-2), (loss, ref_f32)

    # --- prototypes=None path (logits feature dim already == num prototypes) ---
    logits_k = jax.random.normal(k4, (NUM_CROPS * B, K), jnp.float32)
    loss2 = jax.block_until_ready(
        swav_distillation_loss(logits_k, teacher_scores, None, **cfg))
    ref2 = reference_loss(logits_k, teacher_scores, None, **cfg)
    assert bool(jnp.isfinite(loss2)), f"non-finite loss {loss2}"
    assert jnp.allclose(loss2, ref2, rtol=1e-3, atol=1e-3), (loss2, ref2)

    print("KERNEL_OK")
</pallas_src>

<mosaic_0001>
module attributes {stable_mosaic.version = 11 : i64} {
  func.func @_sinkhorn_kernel(%arg0: i32, %arg1: memref<8x128xf32, #tpu.memory_space<vmem>>, %arg2: memref<8x128xf32, #tpu.memory_space<vmem>>) attributes {dimension_semantics = [#tpu.dimension_semantics<parallel>], iteration_bounds = array<i64: 2>, scalar_prefetch = 0 : i64, scratch_operands = 0 : i64, tpu.core_type = #tpu.core_type<tc>, window_params = [{transform_indices = @transform_0, window_bounds = array<i64: 8, 128>}, {transform_indices = @transform_1, window_bounds = array<i64: 8, 128>}]} {
    %c0 = arith.constant 0 : index
    %c0_0 = arith.constant 0 : index
    %0 = vector.load %arg1[%c0, %c0_0] : memref<8x128xf32, #tpu.memory_space<vmem>>, vector<8x128xf32>
    %cst = arith.constant 2.000000e+01 : f32
    %1 = vector.broadcast %cst : f32 to vector<8x128xf32>
    %2 = arith.mulf %0, %1 : vector<8x128xf32>
    %3 = vector.shape_cast %2 : vector<8x128xf32> to vector<1x8x128xf32>
    %cst_1 = arith.constant dense<0xFF800000> : vector<1xf32>
    %4 = vector.multi_reduction <maximumf>, %3, %cst_1 [1, 2] : vector<1x8x128xf32> to vector<1xf32>
    %5 = vector.shape_cast %4 : vector<1xf32> to vector<1x1x1xf32>
    %6 = vector.extract %5[0, 0, 0] : f32 from vector<1x1x1xf32>
    %7 = vector.broadcast %6 : f32 to vector<8x128xf32>
    %8 = arith.subf %2, %7 : vector<8x128xf32>
    %9 = math.exp %8 : vector<8x128xf32>
    %10 = vector.shape_cast %9 : vector<8x128xf32> to vector<1x8x128xf32>
    %cst_2 = arith.constant dense<0.000000e+00> : vector<1xf32>
    %11 = vector.multi_reduction <add>, %10, %cst_2 [1, 2] : vector<1x8x128xf32> to vector<1xf32>
    %12 = vector.shape_cast %11 : vector<1xf32> to vector<1x1x1xf32>
    %13 = vector.extract %12[0, 0, 0] : f32 from vector<1x1x1xf32>
    %cst_3 = arith.constant 1.000000e+00 : f32
    %14 = arith.divf %cst_3, %13 : f32
    %15 = vector.broadcast %14 : f32 to vector<8x128xf32>
    %16 = arith.mulf %9, %15 : vector<8x128xf32>
    %cst_4 = arith.constant dense<0.000000e+00> : vector<128xf32>
    %17 = vector.multi_reduction <add>, %16, %cst_4 [0] : vector<8x128xf32> to vector<128xf32>
    %18 = vector.shape_cast %17 : vector<128xf32> to vector<1x128xf32>
    %19 = vector.shape_cast %18 : vector<1x128xf32> to vector<1x1x128xf32>
    %cst_5 = arith.constant dense<0x7F800000> : vector<1xf32>
    %20 = vector.multi_reduction <minimumf>, %19, %cst_5 [1, 2] : vector<1x1x128xf32> to vector<1xf32>
    %21 = vector.shape_cast %20 : vector<1xf32> to vector<1x1x1xf32>
    %22 = vector.extract %21[0, 0, 0] : f32 from vector<1x1x1xf32>
    %cst_6 = arith.constant 0.000000e+00 : f32
    %23 = arith.cmpf oeq, %22, %cst_6 : f32
    %cst_7 = arith.constant 9.99999996E-13 : f32
    %cst_8 = arith.constant 0.000000e+00 : f32
    %24 = arith.select %23, %cst_7, %cst_8 : f32
    %25 = vector.broadcast %24 : f32 to vector<8x128xf32>
    %26 = arith.addf %16, %25 : vector<8x128xf32>
    %cst_9 = arith.constant 8.000000e+00 : f32
    %27 = arith.mulf %cst_9, %24 : f32
    %28 = vector.broadcast %27 : f32 to vector<1x128xf32>
    %29 = arith.addf %18, %28 : vector<1x128xf32>
    %30 = tpu.reciprocal %29 : vector<1x128xf32> -> vector<1x128xf32>
    %cst_10 = arith.constant 7.812500e-03 : f32
    %31 = vector.broadcast %cst_10 : f32 to vector<1x128xf32>
    %32 = arith.mulf %31, %30 : vector<1x128xf32>
    %33 = vector.broadcast %32 : vector<1x128xf32> to vector<8x128xf32>
    %34 = arith.mulf %26, %33 : vector<8x128xf32>
    %cst_11 = arith.constant dense<0.000000e+00> : vector<8xf32>
    %35 = vector.multi_reduction <add>, %34, %cst_11 [1] : vector<8x128xf32> to vector<8xf32>
    %36 = vector.shape_cast %35 : vector<8xf32> to vector<8x1xf32>
    %37 = tpu.reciprocal %36 : vector<8x1xf32> -> vector<8x1xf32>
    %cst_12 = arith.constant 1.250000e-01 : f32
    %38 = vector.broadcast %cst_12 : f32 to vector<8x1xf32>
    %39 = arith.mulf %38, %37 : vector<8x1xf32>
    %40 = vector.broadcast %39 : vector<8x1xf32> to vector<8x128xf32>
    %41 = arith.mulf %34, %40 : vector<8x128xf32>
    %cst_13 = arith.constant dense<0.000000e+00> : vector<128xf32>
    %42 = vector.multi_reduction <add>, %41, %cst_13 [0] : vector<8x128xf32> to vector<128xf32>
    %43 = vector.shape_cast %42 : vector<128xf32> to vector<1x128xf32>
    %44 = vector.shape_cast %43 : vector<1x128xf32> to vector<1x1x128xf32>
    %cst_14 = arith.constant dense<0x7F800000> : vector<1xf32>
    %45 = vector.multi_reduction <minimumf>, %44, %cst_14 [1, 2] : vector<1x1x128xf32> to vector<1xf32>
    %46 = vector.shape_cast %45 : vector<1xf32> to vector<1x1x1xf32>
    %47 = vector.extract %46[0, 0, 0] : f32 from vector<1x1x1xf32>
    %cst_15 = arith.constant 0.000000e+00 : f32
    %48 = arith.cmpf oeq, %47, %cst_15 : f32
    %cst_16 = arith.constant 9.99999996E-13 : f32
    %cst_17 = arith.constant 0.000000e+00 : f32
    %49 = arith.select %48, %cst_16, %cst_17 : f32
    %50 = vector.broadcast %49 : f32 to vector<8x128xf32>
    %51 = arith.addf %41, %50 : vector<8x128xf32>
    %cst_18 = arith.constant 8.000000e+00 : f32
    %52 = arith.mulf %cst_18, %49 : f32
    %53 = vector.broadcast %52 : f32 to vector<1x128xf32>
    %54 = arith.addf %43, %53 : vector<1x128xf32>
    %55 = tpu.reciprocal %54 : vector<1x128xf32> -> vector<1x128xf32>
    %cst_19 = arith.constant 7.812500e-03 : f32
    %56 = vector.broadcast %cst_19 : f32 to vector<1x128xf32>
    %57 = arith.mulf %56, %55 : vector<1x128xf32>
    %58 = vector.broadcast %57 : vector<1x128xf32> to vector<8x128xf32>
    %59 = arith.mulf %51, %58 : vector<8x128xf32>
    %cst_20 = arith.constant dense<0.000000e+00> : vector<8xf32>
    %60 = vector.multi_reduction <add>, %59, %cst_20 [1] : vector<8x128xf32> to vector<8xf32>
    %61 = vector.shape_cast %60 : vector<8xf32> to vector<8x1xf32>
    %62 = tpu.reciprocal %61 : vector<8x1xf32> -> vector<8x1xf32>
    %cst_21 = arith.constant 1.250000e-01 : f32
    %63 = vector.broadcast %cst_21 : f32 to vector<8x1xf32>
    %64 = arith.mulf %63, %62 : vector<8x1xf32>
    %65 = vector.broadcast %64 : vector<8x1xf32> to vector<8x128xf32>
    %66 = arith.mulf %59, %65 : vector<8x128xf32>
    %cst_22 = arith.constant dense<0.000000e+00> : vector<128xf32>
    %67 = vector.multi_reduction <add>, %66, %cst_22 [0] : vector<8x128xf32> to vector<128xf32>
    %68 = vector.shape_cast %67 : vector<128xf32> to vector<1x128xf32>
    %69 = vector.shape_cast %68 : vector<1x128xf32> to vector<1x1x128xf32>
    %cst_23 = arith.constant dense<0x7F800000> : vector<1xf32>
    %70 = vector.multi_reduction <minimumf>, %69, %cst_23 [1, 2] : vector<1x1x128xf32> to vector<1xf32>
    %71 = vector.shape_cast %70 : vector<1xf32> to vector<1x1x1xf32>
    %72 = vector.extract %71[0, 0, 0] : f32 from vector<1x1x1xf32>
    %cst_24 = arith.constant 0.000000e+00 : f32
    %73 = arith.cmpf oeq, %72, %cst_24 : f32
    %cst_25 = arith.constant 9.99999996E-13 : f32
    %cst_26 = arith.constant 0.000000e+00 : f32
    %74 = arith.select %73, %cst_25, %cst_26 : f32
    %75 = vector.broadcast %74 : f32 to vector<8x128xf32>
    %76 = arith.addf %66, %75 : vector<8x128xf32>
    %cst_27 = arith.constant 8.000000e+00 : f32
    %77 = arith.mulf %cst_27, %74 : f32
    %78 = vector.broadcast %77 : f32 to vector<1x128xf32>
    %79 = arith.addf %68, %78 : vector<1x128xf32>
    %80 = tpu.reciprocal %79 : vector<1x128xf32> -> vector<1x128xf32>
    %cst_28 = arith.constant 7.812500e-03 : f32
    %81 = vector.broadcast %cst_28 : f32 to vector<1x128xf32>
    %82 = arith.mulf %81, %80 : vector<1x128xf32>
    %83 = vector.broadcast %82 : vector<1x128xf32> to vector<8x128xf32>
    %84 = arith.mulf %76, %83 : vector<8x128xf32>
    %cst_29 = arith.constant dense<0.000000e+00> : vector<8xf32>
    %85 = vector.multi_reduction <add>, %84, %cst_29 [1] : vector<8x128xf32> to vector<8xf32>
    %86 = vector.shape_cast %85 : vector<8xf32> to vector<8x1xf32>
    %87 = tpu.reciprocal %86 : vector<8x1xf32> -> vector<8x1xf32>
    %cst_30 = arith.constant 1.250000e-01 : f32
    %88 = vector.broadcast %cst_30 : f32 to vector<8x1xf32>
    %89 = arith.mulf %88, %87 : vector<8x1xf32>
    %90 = vector.broadcast %89 : vector<8x1xf32> to vector<8x128xf32>
    %91 = arith.mulf %84, %90 : vector<8x128xf32>
    %cst_31 = arith.constant dense<0.000000e+00> : vector<8xf32>
    %92 = vector.multi_reduction <add>, %91, %cst_31 [1] : vector<8x128xf32> to vector<8xf32>
    %93 = vector.shape_cast %92 : vector<8xf32> to vector<8x1xf32>
    %94 = tpu.reciprocal %93 : vector<8x1xf32> -> vector<8x1xf32>
    %95 = vector.broadcast %94 : vector<8x1xf32> to vector<8x128xf32>
    %96 = arith.mulf %91, %95 : vector<8x128xf32>
    %c0_32 = arith.constant 0 : index
    %c0_33 = arith.constant 0 : index
    %97 = vector.load %arg2[%c0_32, %c0_33] : memref<8x128xf32, #tpu.memory_space<vmem>>, vector<8x128xf32>
    tpu.vector_store %arg2[%c0_32, %c0_33], %96 {strides = array<i32>} : memref<8x128xf32, #tpu.memory_space<vmem>>, vector<8x128xf32>,
    return
  }
  func.func @transform_0(%arg0: i32) -> (i32, i32) {
    %c0_i32 = arith.constant 0 : i32
    %c0_i32_0 = arith.constant 0 : i32
    return %arg0, %c0_i32 : i32, i32
  }
  func.func @transform_1(%arg0: i32) -> (i32, i32) {
    %c0_i32 = arith.constant 0 : i32
    %c0_i32_0 = arith.constant 0 : i32
    return %arg0, %c0_i32 : i32, i32
  }
}

</mosaic_0001>

<llo_original>
// kernel: tpu_custom_call.1
$region0: #{tpu_custom_call.1}
  #allocation0 [shape = 'u32[]', space=smem, size = 0x4, offset = 0x4, fixed_abs, tag = 'smem constant byte address 0x4 - core index']
  #allocation1 [shape = 'u32[144,128]{1,0:T(1,128)}', space=vmem, size = 0x12000, scoped, tag = 'internal scratch']
  %s0 = inlined_call_operand.hbm [shape: f32[16,128], index: 0, kind: input, shape index: {}]
  %s1 = inlined_call_operand.hbm [shape: f32[16,128], index: 1, kind: output, shape index: {}]
  %s2 = sld [smem:[#allocation0]]
  $region41: #{tpu_custom_call.1} parent=0
    _
  %s4 = ssub.s32 1, %s2
  %s5 = scalar_select 0, %s4, %s2
  $region1: #{tpu_custom_call.1} parent=0
    #allocation2 [shape = 'u8[8192]{0}', space=vmem, size = 0x2000, scoped, tag = 'input window, operand 0']
    #allocation3 [shape = 's32[2]{0}', space=sflag, size = 0x8, scoped, tag = 'scoped memory for tpu_custom_call.1']
    #allocation4 [shape = 's32[2]{0}', space=sflag, size = 0x8, scoped, tag = 'scoped memory for tpu_custom_call.1']
    #allocation5 [shape = 'u8[8192]{0}', space=vmem, size = 0x2000, scoped, tag = 'output window, operand 0']
    %6 = vsyncpa [#allocation3], 0
    %s7 = scalar_lea.sflag [#allocation3], 1
    %8 = vsyncpa %s7, 0
    %9 = vsyncpa [#allocation4], 0
    %s10 = scalar_lea.sflag [#allocation4], 1
    %11 = vsyncpa %s10, 0
    loop: start=0, step=1, limit=4
    $region2: #{tpu_custom_call.1} parent=1 // loop_pre_header
      _
    $region3: #{tpu_custom_call.1} parent=1 // loop_header
      %s13 = sphi 0, %s17
      %p14 = scmp.ge.s32.totalorder %s13, 4
      %s23 = sphi 0, %s25
      %s26 = sphi 0, %s23
      %s27 = sphi 0, %s26
      %s43 = sphi 0, %s27
      %s49 = sphi 0, %s51
      %s52 = sphi 0, %s49
      %s53 = sphi 0, %s52
      %s69 = sphi 0, %s53
    $region4: #{tpu_custom_call.1} parent=1 // loop_header_branch
      %16 = sbr.rel (%p14) target = $region8
    $region5: #{tpu_custom_call.1} parent=1 // loop_body
      %s18 = ssub.s32 %s13, 1
      %s19 = ssub.s32 %s13, 2
      %s20 = sadd.s32 %s13, 1
      %s21 = ssub.s32 %s13, %s20
      %p22 = scmp.eq.s32.totalorder %s21, 0
      %s24 = sadd.s32 %s23, 1
      %s25 = scalar_select %p22, %s23, %s24
      %p28 = pneg %p22
      %p29 = scmp.eq.s32.totalorder %s13, 1
      %p30 = por %p28, %p29
      %p31 = scmp.ne.s32.totalorder %s23, %s26
      %p32 = scmp.eq.s32.totalorder %s13, 0
      %p33 = por %p31, %p32
      %p34 = scmp.ne.s32.totalorder %s23, %s26
      %p35 = scmp.eq.s32.totalorder %s18, 1
      %p36 = por %p34, %p35
      %p37 = scmp.ne.s32.totalorder %s26, %s27
      %p38 = scmp.eq.s32.totalorder %s18, 0
      %p39 = por %p37, %p38
      %p40 = scmp.ne.s32.totalorder %s26, %s27
      %p41 = scmp.eq.s32.totalorder %s19, 1
      %p42 = por %p40, %p41
      %p44 = scmp.ne.s32.totalorder %s27, %s43
      %p45 = scmp.eq.s32.totalorder %s19, 0
      %p46 = por %p44, %p45
      %s47 = ssub.s32 %s13, %s20
      %p48 = scmp.eq.s32.totalorder %s47, 0
      %s50 = sadd.s32 %s49, 1
      %s51 = scalar_select %p48, %s49, %s50
      %p54 = pneg %p48
      %p55 = scmp.eq.s32.totalorder %s13, 1
      %p56 = por %p54, %p55
      %p57 = scmp.ne.s32.totalorder %s49, %s52
      %p58 = scmp.eq.s32.totalorder %s13, 0
      %p59 = por %p57, %p58
      %p60 = scmp.ne.s32.totalorder %s49, %s52
      %p61 = scmp.eq.s32.totalorder %s18, 1
      %p62 = por %p60, %p61
      %p63 = scmp.ne.s32.totalorder %s52, %s53
      %p64 = scmp.eq.s32.totalorder %s18, 0
      %p65 = por %p63, %p64
      %p66 = scmp.ne.s32.totalorder %s52, %s53
      %p67 = scmp.eq.s32.totalorder %s19, 1
      %p68 = por %p66, %p67
      %p70 = scmp.ne.s32.totalorder %s53, %s69
      %p71 = scmp.eq.s32.totalorder %s19, 0
      %p72 = por %p70, %p71
      %p73 = scmp.le.s32.totalorder 1, %s13
      %p74 = scmp.lt.s32.totalorder %s13, 3
      %p75 = pnand %p73, %p74
      %p76 = pneg %p75
      // Predicated region
      $region9: #{tpu_custom_call.1} parent=5 // pred_check
        _
      $region10: #{tpu_custom_call.1} parent=5 // pred_check_branch
        %78 = sbr.rel (%p75) target = $region12
      $region11: #{tpu_custom_call.1} parent=5 // pred_region
        %s79 = ssub.s32 %s13, 1
      $region12: #{tpu_custom_call.1} parent=5 // pred_fallthru
        _
      %p80 = scmp.lt.s32.totalorder %s13, 2
      // Predicated region
      $region13: #{tpu_custom_call.1} parent=5 // pred_check
        %p81 = pneg %p80
      $region14: #{tpu_custom_call.1} parent=5 // pred_check_branch
        %83 = sbr.rel (%p81) target = $region16
      $region15: #{tpu_custom_call.1} parent=5 // pred_region
        // Predicated region
        $region17: #{tpu_custom_call.1} parent=15 // pred_check
          %p84 = pneg %p33
        $region18: #{tpu_custom_call.1} parent=15 // pred_check_branch
          %86 = sbr.rel (%p84) target = $region20
        $region19: #{tpu_custom_call.1} parent=15 // pred_region
          %s87 = sand.u32 %s23, 1
          %s88 = scalar_lea.sflag [#allocation3], %s87
          %s89 = sand.u32 %s23, 1
          %s90 = smul.addr %s89, 8
          %s91 = scalar_lea.vmem [#allocation2], %s90
          %s93 = ssub.s32 128, 128
          %94 = vsyncadd %s88, %s93
          %s95 = smul.addr %s13, 128
          %s96 = scalar_lea.hbm %s0, %s95
          %s98 = sshll.u32 %s91, 4
          %s99 = int_to_ptr.vmem [resolvable:$true] %s98
          %101 = dma.hbm_to_vmem [thread:$0]  %s96, 128, %s99, %s88
        $region20: #{tpu_custom_call.1} parent=15 // pred_fallthru
          _
      $region16: #{tpu_custom_call.1} parent=5 // pred_fallthru
        _
      %p102 = scmp.le.s32.totalorder 1, %s13
      %p103 = scmp.lt.s32.totalorder %s13, 3
      %p104 = pnand %p102, %p103
      %p105 = pneg %p104
      // Predicated region
      $region21: #{tpu_custom_call.1} parent=5 // pred_check
        _
      $region22: #{tpu_custom_call.1} parent=5 // pred_check_branch
        %107 = sbr.rel (%p104) target = $region24
      $region23: #{tpu_custom_call.1} parent=5 // pred_region
        %s108 = ssub.s32 %s13, 1
        %s109 = sand.u32 %s26, 1
        %s110 = scalar_lea.sflag [#allocation3], %s109
        %s111 = sand.u32 %s26, 1
        %s112 = smul.addr %s111, 8
        %s113 = scalar_lea.vmem [#allocation2], %s112
        // Predicated region
        $region25: #{tpu_custom_call.1} parent=23 // pred_check
          %p114 = pneg %p39
        $region26: #{tpu_custom_call.1} parent=23 // pred_check_branch
          %116 = sbr.rel (%p114) target = $region28
        $region27: #{tpu_custom_call.1} parent=23 // pred_region
          %117 = dma.done %s110, 128
        $region28: #{tpu_custom_call.1} parent=23 // pred_fallthru
          _
        %s118 = sand.u32 %s26, 1
        %s119 = scalar_lea.sflag [#allocation3], %s118
        %s120 = sand.u32 %s26, 1
        %s121 = smul.addr %s120, 8
        %s122 = scalar_lea.vmem [#allocation2], %s121
        %p123 = pneg %p39
        %p124 = pneg %p36
        %p125 = pneg %p65
        %p126 = pneg %p62
        %s127 = sand.u32 %s52, 1
        %s128 = scalar_lea.sflag [#allocation4], %s127
        %s129 = sand.u32 %s52, 1
        %s130 = smul.addr %s129, 8
        %s131 = scalar_lea.vmem [#allocation5], %s130
        %v132 = vld [vmem:[%s113] sm:$0xff]
        %v133 = vmul.f32 %v132, 20.0
        %134 = vmax.xlane.f32.xlu0 %v133
        %v135 = vpop.xlane.xlu0 %134
        %v136 = vrot.slane %v135, 4
        %v137 = vmax.f32 %v135, %v136
        %v138 = vrot.slane %v137, 2
        %v139 = vmax.f32 %v137, %v138
        %v140 = vrot.slane %v139, 1
        %v141 = vmax.f32 %v139, %v140
        %s142 = vtos %v141
        %v143 = vstv %s142
        %v144 = vsub.f32 %v133, %v143
        %v145 = vmul.f32 %v144, 1.442695
        %v146 = vpow.pop %v145
        %147 = vadd.xlane.f32.xlu0 %v146
        %v148 = vpop.xlane.xlu0 %147
        %v149 = vrot.slane %v148, 4
        %v150 = vadd.f32 %v148, %v149
        %v151 = vrot.slane %v150, 2
        %v152 = vadd.f32 %v150, %v151
        %v153 = vrot.slane %v152, 1
        %v154 = vadd.f32 %v152, %v153
        %s155 = vtos %v154
        %v156 = vstv %s155
        %v157 = vrcp.pop %v156
        %s158 = vtos %v157
        %v159 = vstv %s158
        %v160 = vmul.f32 %v146, %v159
        %v161 = vrot.slane %v160, 4
        %v162 = vadd.f32 %v160, %v161
        %v163 = vrot.slane %v162, 2
        %v164 = vadd.f32 %v162, %v163
        %v165 = vrot.slane %v164, 1
        %v166 = vadd.f32 %v164, %v165
        %167 = vmin.xlane.f32.xlu0 %v166
        %v168 = vpop.xlane.xlu0 %167
        %s169 = vtos %v168
        %p170 = scmp.eq.f32.partialorder %s169, 0.0
        %s171 = scalar_select %p170, 1e-12, 0.0
        %v172 = vstv %s171
        %v173 = vadd.f32 %v160, %v172
        %s174 = smul.f32 %s171, 8.0
        %v175 = vstv %s174
        %v176 = vadd.f32 %v166, %v175
        %v177 = vrcp.pop %v176
        %v178 = vmul.f32 %v177, 0.0078125
        %v179 = vmul.f32 %v173, %v178
        %180 = vadd.xlane.f32.xlu0 %v179
        %v181 = vpop.xlane.xlu0 %180
        %v182 = vrcp.pop %v181
        %v183 = vmul.f32 %v182, 0.125
        %v184 = vmul.f32 %v179, %v183
        %v185 = vrot.slane %v184, 4
        %v186 = vadd.f32 %v184, %v185
        %v187 = vrot.slane %v186, 2
        %v188 = vadd.f32 %v186, %v187
        %v189 = vrot.slane %v188, 1
        %v190 = vadd.f32 %v188, %v189
        %191 = vmin.xlane.f32.xlu0 %v190
        %v192 = vpop.xlane.xlu0 %191
        %s193 = vtos %v192
        %p194 = scmp.eq.f32.partialorder %s193, 0.0
        %s195 = scalar_select %p194, 1e-12, 0.0
        %v196 = vstv %s195
        %v197 = vadd.f32 %v184, %v196
        %s198 = smul.f32 %s195, 8.0
        %v199 = vstv %s198
        %v200 = vadd.f32 %v190, %v199
        %v201 = vrcp.pop %v200
        %v202 = vmul.f32 %v201, 0.0078125
        %v203 = vmul.f32 %v197, %v202
        %204 = vadd.xlane.f32.xlu0 %v203
        %v205 = vpop.xlane.xlu0 %204
        %v206 = vrcp.pop %v205
        %v207 = vmul.f32 %v206, 0.125
        %v208 = vmul.f32 %v203, %v207
        %v209 = vrot.slane %v208, 4
        %v210 = vadd.f32 %v208, %v209
        %v211 = vrot.slane %v210, 2
        %v212 = vadd.f32 %v210, %v211
        %v213 = vrot.slane %v212, 1
        %v214 = vadd.f32 %v212, %v213
        %215 = vmin.xlane.f32.xlu0 %v214
        %v216 = vpop.xlane.xlu0 %215
        %s217 = vtos %v216
        %p218 = scmp.eq.f32.partialorder %s217, 0.0
        %s219 = scalar_select %p218, 1e-12, 0.0
        %v220 = vstv %s219
        %v221 = vadd.f32 %v208, %v220
        %s222 = smul.f32 %s219, 8.0
        %v223 = vstv %s222
        %v224 = vadd.f32 %v214, %v223
        %v225 = vrcp.pop %v224
        %v226 = vmul.f32 %v225, 0.0078125
        %v227 = vmul.f32 %v221, %v226
        %228 = vadd.xlane.f32.xlu0 %v227
        %v229 = vpop.xlane.xlu0 %228
        %v230 = vrcp.pop %v229
        %v231 = vmul.f32 %v230, 0.125
        %v232 = vmul.f32 %v227, %v231
        %233 = vadd.xlane.f32.xlu0 %v232
        %v234 = vpop.xlane.xlu0 %233
        %v235 = vrcp.pop %v234
        %v236 = vmul.f32 %v232, %v235
        %237 = vst [vmem:[%s131] sm:$0xff] %v236
        %s238 = sand.u32 %s52, 1
        %s239 = scalar_lea.sflag [#allocation4], %s238
        %s240 = sand.u32 %s52, 1
        %s241 = smul.addr %s240, 8
        %s242 = scalar_lea.vmem [#allocation5], %s241
        // Predicated region
        $region29: #{tpu_custom_call.1} parent=23 // pred_check
          %p243 = pneg %p62
        $region30: #{tpu_custom_call.1} parent=23 // pred_check_branch
          %245 = sbr.rel (%p243) target = $region32
        $region31: #{tpu_custom_call.1} parent=23 // pred_region
          %s247 = ssub.s32 128, 128
          %248 = vsyncadd %s239, %s247
          %s249 = smul.addr %s18, 128
          %s250 = scalar_lea.hbm %s1, %s249
          %s252 = sshll.u32 %s242, 4
          %s253 = int_to_ptr.vmem [resolvable:$true] %s252
          %255 = dma.vmem_to_hbm [thread:$0]  %s253, 128, %s250, %s239
        $region32: #{tpu_custom_call.1} parent=23 // pred_fallthru
          _
      $region24: #{tpu_custom_call.1} parent=5 // pred_fallthru
        _
      %p256 = scmp.le.s32.totalorder 2, %s13
      // Predicated region
      $region33: #{tpu_custom_call.1} parent=5 // pred_check
        %p257 = pneg %p256
      $region34: #{tpu_custom_call.1} parent=5 // pred_check_branch
        %259 = sbr.rel (%p257) target = $region36
      $region35: #{tpu_custom_call.1} parent=5 // pred_region
        %s260 = ssub.s32 %s13, 2
        // Predicated region
        $region37: #{tpu_custom_call.1} parent=35 // pred_check
          %p261 = pneg %p68
        $region38: #{tpu_custom_call.1} parent=35 // pred_check_branch
          %263 = sbr.rel (%p261) target = $region40
        $region39: #{tpu_custom_call.1} parent=35 // pred_region
          %s264 = sand.u32 %s53, 1
          %s265 = scalar_lea.sflag [#allocation4], %s264
          %s266 = sand.u32 %s53, 1
          %s267 = smul.addr %s266, 8
          %s268 = scalar_lea.vmem [#allocation5], %s267
          %269 = dma.done %s265, 128
        $region40: #{tpu_custom_call.1} parent=35 // pred_fallthru
          _
      $region36: #{tpu_custom_call.1} parent=5 // pred_fallthru
        _
    $region6: #{tpu_custom_call.1} parent=1 // loop_footer
      %s17 = sadd.s32 1, %s13
    $region7: #{tpu_custom_call.1} parent=1 // loop_footer_branch
      %12 = sbr.rel target = $region3
    $region8: #{tpu_custom_call.1} parent=1 // loop_exit
      _
    %270 = vsyncpa [#allocation3], 1
    %s271 = scalar_lea.sflag [#allocation3], 1
    %272 = vsyncpa %s271, 1
    %273 = vsyncpa [#allocation4], 1
    %s274 = scalar_lea.sflag [#allocation4], 1
    %275 = vsyncpa %s274, 1

</llo_original>
